<compile_context>
chip_gen: v5e
topology: v5e:2x2
jax: 0.10.0
libtpu: 0.0.40
codegen_flags: <defaults>
</compile_context>

<pallas_src>
import math
import functools

import jax
import jax.numpy as jnp
from jax.experimental import pallas as pl
from jax.experimental.pallas import tpu as pltpu


_LANE = 128      # lane granularity (last dim)
_SUBLANE = 8     # sublane granularity (second-to-last dim)
_VMEM_BUDGET = 48 << 20   # target footprint; leaves headroom under 64 MiB/TC (v7x)


def _round_up(x, m):
    return ((x + m - 1) // m) * m


def _gelu_exact_f32(x):
    # PyTorch nn.GELU() default = exact erf-based GELU.
    # (tanh-approx would move work to the EUP slot but changes numerics vs nn.GELU(); keep erf.)
    return 0.5 * x * (1.0 + jax.lax.erf(x * (1.0 / math.sqrt(2.0))))


def _ffn_kernel(x_ref, w1_ref, b1_ref, w2_ref, b2_ref, o_ref):
    # x_ref:  (tm, dim_p)      streamed row tile of tokens
    # w1_ref: (dim_p, hid_p)   resident weight (constant index_map -> single HBM fetch)
    # b1_ref: (1, hid_p)
    # w2_ref: (hid_p, dim_p)   resident weight
    # b2_ref: (1, dim_p)
    # o_ref:  (tm, dim_p)
    x = x_ref[...]            # native dtype -- no f32 upcast of matmul operands
    w1 = w1_ref[...]
    w2 = w2_ref[...]

    # First matmul on the MXU, f32 accumulation.
    h = jnp.dot(x, w1, preferred_element_type=jnp.float32)
    h = h + b1_ref[...].astype(jnp.float32)          # bias in f32
    h = _gelu_exact_f32(h)                           # GELU in f32
    # dropout (p=0.1) -> identity in eval mode

    # Second matmul: feed h in the weight dtype (keeps bf16 MXU rate when params are bf16).
    y = jnp.dot(h.astype(w2.dtype), w2, preferred_element_type=jnp.float32)
    y = y + b2_ref[...].astype(jnp.float32)
    # dropout (p=0.1) -> identity in eval mode

    o_ref[...] = y.astype(o_ref.dtype)


def _pick_tile_m(requested, M, dim_p, hid_p, in_bytes, out_bytes, w_bytes):
    """Largest sublane-aligned row tile that (a) <= requested, (b) <= whole problem,
    (c) keeps the estimated VMEM footprint under budget."""
    requested = _round_up(max(int(requested), _SUBLANE), _SUBLANE)
    # Per-row VMEM cost: double-buffered x tile + double-buffered out tile + f32 temps (h, y).
    per_row = 2 * dim_p * in_bytes + 2 * dim_p * out_bytes + 4 * hid_p + 4 * dim_p
    budget = _VMEM_BUDGET - 2 * w_bytes - (2 << 20)   # resident weights (worst-case 2 bufs)
    tm_cap = max(_SUBLANE, (budget // per_row) // _SUBLANE * _SUBLANE) if budget > 0 else _SUBLANE
    tm = min(requested, int(tm_cap), _round_up(M, _SUBLANE))
    return max(_SUBLANE, tm)


@functools.partial(jax.jit, static_argnames=("tile_m",))
def feed_forward(x, w1, b1, w2, b2, *, tile_m=256):
    """ViT FeedForward forward pass (dropout = identity / eval mode).

    x: (B, N, dim); w1: (dim, hidden); b1: (hidden,); w2: (hidden, dim); b2: (dim,).
    Weights already stored (in_features, out_features), i.e. transposed vs. PyTorch.
    Arbitrary B*N / dim / hidden are handled by exact zero-padding to lane/tile multiples.
    """
    B, N, dim = x.shape
    hidden = w1.shape[1]
    out_dtype = x.dtype
    M = B * N

    dim_p = _round_up(dim, _LANE)     # lane-dense output: no masked vst on the last dim
    hid_p = _round_up(hidden, _LANE)

    w_bytes = (dim_p * hid_p * w1.dtype.itemsize + hid_p * dim_p * w2.dtype.itemsize
               + hid_p * b1.dtype.itemsize + dim_p * b2.dtype.itemsize)

    # Row tile: default 256 (MXU-filling); shrunk only when the whole problem is smaller or the
    # VMEM budget (resident weights + streamed tiles + f32 temps) would be exceeded.
    tm = _pick_tile_m(tile_m, M, dim_p, hid_p,
                      x.dtype.itemsize, jnp.dtype(out_dtype).itemsize, w_bytes)

    M_pad = _round_up(M, tm)
    grid_m = M_pad // tm

    # Zero padding is exact: padded input columns hit zero weight rows; padded hidden/output
    # columns carry zero weights and biases (GELU(0) == 0), and are sliced off at the end.
    x2d = jnp.pad(x.reshape(M, dim), ((0, M_pad - M), (0, dim_p - dim)))
    w1_p = jnp.pad(w1, ((0, dim_p - dim), (0, hid_p - hidden)))
    b1_p = jnp.pad(b1, ((0, hid_p - hidden),)).reshape(1, hid_p)
    w2_p = jnp.pad(w2, ((0, hid_p - hidden), (0, dim_p - dim)))
    b2_p = jnp.pad(b2, ((0, dim_p - dim),)).reshape(1, dim_p)

    # --- VMEM limit: resident params (worst-case double-buffered) + streamed tiles + f32 temps.
    act_bytes = tm * dim_p * (x2d.dtype.itemsize + jnp.dtype(out_dtype).itemsize)
    tmp_bytes = tm * hid_p * 4 + tm * dim_p * 4
    vmem_needed = 2 * w_bytes + 2 * act_bytes + tmp_bytes + (4 << 20)
    # Cap at 64 MiB (v7x per-TC physical). For big f32 weights that exceed this, pass bf16
    # params instead (also the recommended fast path on v6e/v7x).
    vmem_limit = int(min(max(vmem_needed, 32 << 20), 64 << 20))

    # --- Cost estimate so XLA schedules surrounding ops sensibly.
    cost = pl.CostEstimate(
        flops=int(2 * M_pad * dim_p * hid_p * 2),          # two matmuls
        transcendentals=int(M_pad * hid_p),                 # erf per hidden activation
        bytes_accessed=int(x2d.size * x2d.dtype.itemsize
                           + w_bytes
                           + M_pad * dim_p * jnp.dtype(out_dtype).itemsize),
    )

    out2d = pl.pallas_call(
        _ffn_kernel,
        out_shape=jax.ShapeDtypeStruct((M_pad, dim_p), out_dtype),
        grid_spec=pltpu.PrefetchScalarGridSpec(
            num_scalar_prefetch=0,
            grid=(grid_m,),
            in_specs=[
                pl.BlockSpec((tm, dim_p), lambda i: (i, 0)),      # x row tile (pipelined)
                pl.BlockSpec((dim_p, hid_p), lambda i: (0, 0)),   # w1 resident (constant index)
                pl.BlockSpec((1, hid_p), lambda i: (0, 0)),       # b1
                pl.BlockSpec((hid_p, dim_p), lambda i: (0, 0)),   # w2 resident
                pl.BlockSpec((1, dim_p), lambda i: (0, 0)),       # b2
            ],
            out_specs=pl.BlockSpec((tm, dim_p), lambda i: (i, 0)),
        ),
        compiler_params=pltpu.CompilerParams(
            dimension_semantics=("parallel",),     # row tiles shard across TensorCores
            vmem_limit_bytes=vmem_limit,
        ),
        cost_estimate=cost,
    )(x2d, w1_p, b1_p, w2_p, b2_p)

    return out2d[:M, :dim].reshape(B, N, dim)


def init_params(key, dim, hidden_dim, dtype=jnp.float32):
    """Deterministic init matching PyTorch nn.Linear defaults: U(-1/sqrt(fan_in), 1/sqrt(fan_in))."""
    k1, k2, k3, k4 = jax.random.split(key, 4)
    bound1 = 1.0 / math.sqrt(dim)
    bound2 = 1.0 / math.sqrt(hidden_dim)
    w1 = jax.random.uniform(k1, (dim, hidden_dim), dtype, -bound1, bound1)
    b1 = jax.random.uniform(k2, (hidden_dim,), dtype, -bound1, bound1)
    w2 = jax.random.uniform(k3, (hidden_dim, dim), dtype, -bound2, bound2)
    b2 = jax.random.uniform(k4, (dim,), dtype, -bound2, bound2)
    return w1, b1, w2, b2


def _reference(x, w1, b1, w2, b2):
    return _gelu_exact_f32(x @ w1 + b1) @ w2 + b2


if __name__ == "__main__":
    key = jax.random.PRNGKey(0)
    kx, kp = jax.random.split(key)

    # Small but lane-dense shapes (dim multiple of 128 keeps output stores unmasked).
    B, N, dim, hidden_dim = 2, 8, 128, 256
    x = jax.random.normal(kx, (B, N, dim), jnp.float32)
    w1, b1, w2, b2 = init_params(kp, dim, hidden_dim)

    out = jax.block_until_ready(feed_forward(x, w1, b1, w2, b2))
    ref = _reference(x, w1, b1, w2, b2)
    assert out.shape == (B, N, dim)
    # Tolerance covers TPU MXU default-precision f32 matmul (possible bf16-pass demotion).
    err = float(jnp.max(jnp.abs(out - ref)))
    assert err < 1e-2, f"f32 mismatch vs reference: max abs err = {err}"

    # Awkward ViT-style token count (197) exercises the row-padding / cdiv path.
    x2 = jax.random.normal(jax.random.PRNGKey(1), (1, 197, dim), jnp.float32)
    out2 = jax.block_until_ready(feed_forward(x2, w1, b1, w2, b2))
    ref2 = _reference(x2, w1, b1, w2, b2)
    err2 = float(jnp.max(jnp.abs(out2 - ref2)))
    assert out2.shape == (1, 197, dim)
    assert err2 < 1e-2, f"padded-token mismatch vs reference: max abs err = {err2}"

    # bf16 fast path (native-dtype matmuls, f32 accumulation) -- the recommended v6e/v7x config.
    xb = x.astype(jnp.bfloat16)
    w1b, b1b, w2b, b2b = (p.astype(jnp.bfloat16) for p in (w1, b1, w2, b2))
    outb = jax.block_until_ready(feed_forward(xb, w1b, b1b, w2b, b2b))
    errb = float(jnp.max(jnp.abs(outb.astype(jnp.float32) - ref)))
    assert outb.shape == (B, N, dim) and outb.dtype == jnp.bfloat16
    assert errb < 1e-1, f"bf16 mismatch vs f32 reference: max abs err = {errb}"

    print("KERNEL_OK")
</pallas_src>

<mosaic_0001>
module attributes {stable_mosaic.version = 11 : i64} {
  func.func @_ffn_kernel(%arg0: i32, %arg1: memref<16x128xf32, #tpu.memory_space<vmem>>, %arg2: memref<128x256xf32, #tpu.memory_space<vmem>>, %arg3: memref<1x256xf32, #tpu.memory_space<vmem>>, %arg4: memref<256x128xf32, #tpu.memory_space<vmem>>, %arg5: memref<1x128xf32, #tpu.memory_space<vmem>>, %arg6: memref<16x128xf32, #tpu.memory_space<vmem>>) attributes {dimension_semantics = [#tpu.dimension_semantics<parallel>], iteration_bounds = array<i64: 1>, scalar_prefetch = 0 : i64, scratch_operands = 0 : i64, tpu.core_type = #tpu.core_type<tc>, window_params = [{transform_indices = @transform_0, window_bounds = array<i64: 16, 128>}, {pipeline_mode = #tpu.pipeline_mode<synchronous>, transform_indices = @transform_1, window_bounds = array<i64: 128, 256>}, {pipeline_mode = #tpu.pipeline_mode<synchronous>, transform_indices = @transform_2, window_bounds = array<i64: 1, 256>}, {pipeline_mode = #tpu.pipeline_mode<synchronous>, transform_indices = @transform_3, window_bounds = array<i64: 256, 128>}, {pipeline_mode = #tpu.pipeline_mode<synchronous>, transform_indices = @transform_4, window_bounds = array<i64: 1, 128>}, {transform_indices = @transform_5, window_bounds = array<i64: 16, 128>}]} {
    %c0 = arith.constant 0 : index
    %c0_0 = arith.constant 0 : index
    %0 = vector.load %arg1[%c0, %c0_0] : memref<16x128xf32, #tpu.memory_space<vmem>>, vector<16x128xf32>
    %c0_1 = arith.constant 0 : index
    %c0_2 = arith.constant 0 : index
    %1 = vector.load %arg2[%c0_1, %c0_2] : memref<128x256xf32, #tpu.memory_space<vmem>>, vector<128x256xf32>
    %c0_3 = arith.constant 0 : index
    %c0_4 = arith.constant 0 : index
    %2 = vector.load %arg4[%c0_3, %c0_4] : memref<256x128xf32, #tpu.memory_space<vmem>>, vector<256x128xf32>
    %cst = arith.constant dense<0.000000e+00> : vector<16x256xf32>
    %3 = tpu.matmul %0, %1, %cst {dimension_numbers = #tpu.dot_dimension_numbers<[1], [0], [0], [1], [0, 0, 1, 1], [], []>} : vector<16x128xf32>, vector<128x256xf32>, vector<16x256xf32> -> vector<16x256xf32>
    %c0_5 = arith.constant 0 : index
    %c0_6 = arith.constant 0 : index
    %4 = vector.load %arg3[%c0_5, %c0_6] : memref<1x256xf32, #tpu.memory_space<vmem>>, vector<1x256xf32>
    %5 = vector.broadcast %4 : vector<1x256xf32> to vector<16x256xf32>
    %6 = arith.addf %3, %5 : vector<16x256xf32>
    %cst_7 = arith.constant 5.000000e-01 : f32
    %7 = vector.broadcast %cst_7 : f32 to vector<16x256xf32>
    %8 = arith.mulf %7, %6 : vector<16x256xf32>
    %cst_8 = arith.constant 0.707106769 : f32
    %9 = vector.broadcast %cst_8 : f32 to vector<16x256xf32>
    %10 = arith.mulf %6, %9 : vector<16x256xf32>
    %11 = math.erf %10 : vector<16x256xf32>
    %cst_9 = arith.constant 1.000000e+00 : f32
    %12 = vector.broadcast %cst_9 : f32 to vector<16x256xf32>
    %13 = arith.addf %12, %11 : vector<16x256xf32>
    %14 = arith.mulf %8, %13 : vector<16x256xf32>
    %cst_10 = arith.constant dense<0.000000e+00> : vector<16x128xf32>
    %15 = tpu.matmul %14, %2, %cst_10 {dimension_numbers = #tpu.dot_dimension_numbers<[1], [0], [0], [1], [0, 0, 1, 1], [], []>} : vector<16x256xf32>, vector<256x128xf32>, vector<16x128xf32> -> vector<16x128xf32>
    %c0_11 = arith.constant 0 : index
    %c0_12 = arith.constant 0 : index
    %16 = vector.load %arg5[%c0_11, %c0_12] : memref<1x128xf32, #tpu.memory_space<vmem>>, vector<1x128xf32>
    %17 = vector.broadcast %16 : vector<1x128xf32> to vector<16x128xf32>
    %18 = arith.addf %15, %17 : vector<16x128xf32>
    %c0_13 = arith.constant 0 : index
    %c0_14 = arith.constant 0 : index
    %19 = vector.load %arg6[%c0_13, %c0_14] : memref<16x128xf32, #tpu.memory_space<vmem>>, vector<16x128xf32>
    tpu.vector_store %arg6[%c0_13, %c0_14], %18 {strides = array<i32>} : memref<16x128xf32, #tpu.memory_space<vmem>>, vector<16x128xf32>,
    return
  }
  func.func @transform_0(%arg0: i32) -> (i32, i32) {
    %c0_i32 = arith.constant 0 : i32
    %c0_i32_0 = arith.constant 0 : i32
    return %arg0, %c0_i32 : i32, i32
  }
  func.func @transform_1(%arg0: i32) -> (i32, i32) {
    %c0_i32 = arith.constant 0 : i32
    %c0_i32_0 = arith.constant 0 : i32
    %c0_i32_1 = arith.constant 0 : i32
    return %c0_i32, %c0_i32_0 : i32, i32
  }
  func.func @transform_2(%arg0: i32) -> (i32, i32) {
    %c0_i32 = arith.constant 0 : i32
    %c0_i32_0 = arith.constant 0 : i32
    %c0_i32_1 = arith.constant 0 : i32
    return %c0_i32, %c0_i32_0 : i32, i32
  }
  func.func @transform_3(%arg0: i32) -> (i32, i32) {
    %c0_i32 = arith.constant 0 : i32
    %c0_i32_0 = arith.constant 0 : i32
    %c0_i32_1 = arith.constant 0 : i32
    return %c0_i32, %c0_i32_0 : i32, i32
  }
  func.func @transform_4(%arg0: i32) -> (i32, i32) {
    %c0_i32 = arith.constant 0 : i32
    %c0_i32_0 = arith.constant 0 : i32
    %c0_i32_1 = arith.constant 0 : i32
    return %c0_i32, %c0_i32_0 : i32, i32
  }
  func.func @transform_5(%arg0: i32) -> (i32, i32) {
    %c0_i32 = arith.constant 0 : i32
    %c0_i32_0 = arith.constant 0 : i32
    return %arg0, %c0_i32 : i32, i32
  }
}

</mosaic_0001>

<llo_original>
// kernel: feed_forward.1
$region0: #{feed_forward.1}
  #allocation0 [shape = 'u32[]', space=smem, size = 0x4, offset = 0x4, fixed_abs, tag = 'smem constant byte address 0x4 - core index']
  #allocation1 [shape = 'u32[72,128]{1,0:T(1,128)}', space=vmem, size = 0x9000, scoped, tag = 'internal scratch']
  %s0 = inlined_call_operand.hbm [shape: f32[16,128], index: 0, kind: input, shape index: {}]
  %s1 = inlined_call_operand.hbm [shape: f32[128,256], index: 1, kind: input, shape index: {}]
  %s2 = inlined_call_operand.vmem [shape: f32[1,256], index: 2, kind: input, shape index: {}]
  %s3 = inlined_call_operand.hbm [shape: f32[256,128], index: 3, kind: input, shape index: {}]
  %s4 = inlined_call_operand.vmem [shape: f32[1,128], index: 4, kind: input, shape index: {}]
  %s5 = inlined_call_operand.hbm [shape: f32[16,128], index: 5, kind: output, shape index: {}]
  %s6 = sld [smem:[#allocation0]]
  $region42: #{feed_forward.1} parent=0
    _
  %s8 = ssub.s32 1, %s6
  %s9 = scalar_select 0, %s8, %s6
  $region1: #{feed_forward.1} parent=0
    #allocation2 [shape = 'u8[8192]{0}', space=vmem, size = 0x2000, scoped, tag = 'input window, operand 0, single buffered']
    #allocation3 [shape = 's32[1]{0}', space=sflag, size = 0x4, scoped, tag = 'scoped memory for feed_forward.1']
    #allocation4 [shape = 's32[1]{0}', space=sflag, size = 0x4, scoped, tag = 'scoped memory for feed_forward.1']
    #allocation5 [shape = 'u8[131072]{0}', space=vmem, size = 0x20000, scoped, tag = 'input window, operand 1, single buffered']
    #allocation6 [shape = 's32[1]{0}', space=sflag, size = 0x4, scoped, tag = 'scoped memory for feed_forward.1']
    #allocation7 [shape = 'u8[131072]{0}', space=vmem, size = 0x20000, scoped, tag = 'input window, operand 3, single buffered']
    #allocation8 [shape = 'u8[8192]{0}', space=vmem, size = 0x2000, scoped, tag = 'output window, operand 0, single buffered']
    %10 = vsyncpa [#allocation3], 0
    %11 = vsyncpa [#allocation6], 0
    %12 = vsyncpa [#allocation4], 0
    // Predicated region
    $region2: #{feed_forward.1} parent=1 // pred_check
      _
    $region3: #{feed_forward.1} parent=1 // pred_check_branch
      %14 = sbr.rel (0) target = $region5
    $region4: #{feed_forward.1} parent=1 // pred_region
      %16 = vsyncadd [#allocation3], 0
      %s17 = sshll.u32 %s0, 4
      %s18 = int_to_ptr.hbm [resolvable:$true] %s17
      %s19 = sshll.u32 [#allocation2], 4
      %s20 = int_to_ptr.vmem [resolvable:$true] %s19
      %25 = dma.hbm_to_vmem [thread:$0]  %s18, 256, %s20, [#allocation3], 128, 128, 8
    $region5: #{feed_forward.1} parent=1 // pred_fallthru
      _
    // Predicated region
    $region6: #{feed_forward.1} parent=1 // pred_check
      _
    $region7: #{feed_forward.1} parent=1 // pred_check_branch
      %27 = sbr.rel (0) target = $region9
    $region8: #{feed_forward.1} parent=1 // pred_region
      %29 = vsyncadd [#allocation6], 0
      %s30 = sshll.u32 %s1, 4
      %s31 = int_to_ptr.hbm [resolvable:$true] %s30
      %s32 = sshll.u32 [#allocation5], 4
      %s33 = int_to_ptr.vmem [resolvable:$true] %s32
      %38 = dma.hbm_to_vmem [thread:$0]  %s31, 4096, %s33, [#allocation6], 256, 256, 16
    $region9: #{feed_forward.1} parent=1 // pred_fallthru
      _
    // Predicated region
    $region10: #{feed_forward.1} parent=1 // pred_check
      _
    $region11: #{feed_forward.1} parent=1 // pred_check_branch
      %40 = sbr.rel (0) target = $region13
    $region12: #{feed_forward.1} parent=1 // pred_region
      _
    $region13: #{feed_forward.1} parent=1 // pred_fallthru
      _
    // Predicated region
    $region14: #{feed_forward.1} parent=1 // pred_check
      _
    $region15: #{feed_forward.1} parent=1 // pred_check_branch
      %42 = sbr.rel (0) target = $region17
    $region16: #{feed_forward.1} parent=1 // pred_region
      %44 = vsyncadd [#allocation6], 0
      %s45 = sshll.u32 %s3, 4
      %s46 = int_to_ptr.hbm [resolvable:$true] %s45
      %s47 = sshll.u32 [#allocation7], 4
      %s48 = int_to_ptr.vmem [resolvable:$true] %s47
      %53 = dma.hbm_to_vmem [thread:$0]  %s46, 4096, %s48, [#allocation6], 128, 128, 8
    $region17: #{feed_forward.1} parent=1 // pred_fallthru
      _
    // Predicated region
    $region18: #{feed_forward.1} parent=1 // pred_check
      _
    $region19: #{feed_forward.1} parent=1 // pred_check_branch
      %55 = sbr.rel (0) target = $region21
    $region20: #{feed_forward.1} parent=1 // pred_region
      _
    $region21: #{feed_forward.1} parent=1 // pred_fallthru
      _
    // Predicated region
    $region22: #{feed_forward.1} parent=1 // pred_check
      _
    $region23: #{feed_forward.1} parent=1 // pred_check_branch
      %57 = sbr.rel (0) target = $region25
    $region24: #{feed_forward.1} parent=1 // pred_region
      %59 = dma.done [#allocation3], 256
    $region25: #{feed_forward.1} parent=1 // pred_fallthru
      _
    // Predicated region
    $region26: #{feed_forward.1} parent=1 // pred_check
      _
    $region27: #{feed_forward.1} parent=1 // pred_check_branch
      %61 = sbr.rel (0) target = $region29
    $region28: #{feed_forward.1} parent=1 // pred_region
      %63 = dma.done [#allocation6], 4096
    $region29: #{feed_forward.1} parent=1 // pred_fallthru
      _
    // Predicated region
    $region30: #{feed_forward.1} parent=1 // pred_check
      _
    $region31: #{feed_forward.1} parent=1 // pred_check_branch
      %65 = sbr.rel (0) target = $region33
    $region32: #{feed_forward.1} parent=1 // pred_region
      %67 = dma.done [#allocation6], 4096
    $region33: #{feed_forward.1} parent=1 // pred_fallthru
      _
    %v68 = vld [vmem:[#allocation2] sm:$0xff]
    %v69 = vld [vmem:[#allocation2 + $0x8] sm:$0xff]
    %v70 = vld [vmem:[#allocation5] sm:$0xff]
    %v71 = vld [vmem:[#allocation5 + $0x8] sm:$0xff]
    %v72 = vld [vmem:[#allocation5 + $0x10] sm:$0xff]
    %v73 = vld [vmem:[#allocation5 + $0x18] sm:$0xff]
    %v74 = vld [vmem:[#allocation5 + $0x20] sm:$0xff]
    %v75 = vld [vmem:[#allocation5 + $0x28] sm:$0xff]
    %v76 = vld [vmem:[#allocation5 + $0x30] sm:$0xff]
    %v77 = vld [vmem:[#allocation5 + $0x38] sm:$0xff]
    %v78 = vld [vmem:[#allocation5 + $0x40] sm:$0xff]
    %v79 = vld [vmem:[#allocation5 + $0x48] sm:$0xff]
    %v80 = vld [vmem:[#allocation5 + $0x50] sm:$0xff]
    %v81 = vld [vmem:[#allocation5 + $0x58] sm:$0xff]
    %v82 = vld [vmem:[#allocation5 + $0x60] sm:$0xff]
    %v83 = vld [vmem:[#allocation5 + $0x68] sm:$0xff]
    %v84 = vld [vmem:[#allocation5 + $0x70] sm:$0xff]
    %v85 = vld [vmem:[#allocation5 + $0x78] sm:$0xff]
    %v86 = vld [vmem:[#allocation5 + $0x80] sm:$0xff]
    %v87 = vld [vmem:[#allocation5 + $0x88] sm:$0xff]
    %v88 = vld [vmem:[#allocation5 + $0x90] sm:$0xff]
    %v89 = vld [vmem:[#allocation5 + $0x98] sm:$0xff]
    %v90 = vld [vmem:[#allocation5 + $0xa0] sm:$0xff]
    %v91 = vld [vmem:[#allocation5 + $0xa8] sm:$0xff]
    %v92 = vld [vmem:[#allocation5 + $0xb0] sm:$0xff]
    %v93 = vld [vmem:[#allocation5 + $0xb8] sm:$0xff]
    %v94 = vld [vmem:[#allocation5 + $0xc0] sm:$0xff]
    %v95 = vld [vmem:[#allocation5 + $0xc8] sm:$0xff]
    %v96 = vld [vmem:[#allocation5 + $0xd0] sm:$0xff]
    %v97 = vld [vmem:[#allocation5 + $0xd8] sm:$0xff]
    %v98 = vld [vmem:[#allocation5 + $0xe0] sm:$0xff]
    %v99 = vld [vmem:[#allocation5 + $0xe8] sm:$0xff]
    %v100 = vld [vmem:[#allocation5 + $0xf0] sm:$0xff]
    %v101 = vld [vmem:[#allocation5 + $0xf8] sm:$0xff]
    %v102 = vld [vmem:[#allocation7] sm:$0xff]
    %v103 = vld [vmem:[#allocation7 + $0x8] sm:$0xff]
    %v104 = vld [vmem:[#allocation7 + $0x10] sm:$0xff]
    %v105 = vld [vmem:[#allocation7 + $0x18] sm:$0xff]
    %v106 = vld [vmem:[#allocation7 + $0x20] sm:$0xff]
    %v107 = vld [vmem:[#allocation7 + $0x28] sm:$0xff]
    %v108 = vld [vmem:[#allocation7 + $0x30] sm:$0xff]
    %v109 = vld [vmem:[#allocation7 + $0x38] sm:$0xff]
    %v110 = vld [vmem:[#allocation7 + $0x40] sm:$0xff]
    %v111 = vld [vmem:[#allocation7 + $0x48] sm:$0xff]
    %v112 = vld [vmem:[#allocation7 + $0x50] sm:$0xff]
    %v113 = vld [vmem:[#allocation7 + $0x58] sm:$0xff]
    %v114 = vld [vmem:[#allocation7 + $0x60] sm:$0xff]
    %v115 = vld [vmem:[#allocation7 + $0x68] sm:$0xff]
    %v116 = vld [vmem:[#allocation7 + $0x70] sm:$0xff]
    %v117 = vld [vmem:[#allocation7 + $0x78] sm:$0xff]
    %v118 = vld [vmem:[#allocation7 + $0x80] sm:$0xff]
    %v119 = vld [vmem:[#allocation7 + $0x88] sm:$0xff]
    %v120 = vld [vmem:[#allocation7 + $0x90] sm:$0xff]
    %v121 = vld [vmem:[#allocation7 + $0x98] sm:$0xff]
    %v122 = vld [vmem:[#allocation7 + $0xa0] sm:$0xff]
    %v123 = vld [vmem:[#allocation7 + $0xa8] sm:$0xff]
    %v124 = vld [vmem:[#allocation7 + $0xb0] sm:$0xff]
    %v125 = vld [vmem:[#allocation7 + $0xb8] sm:$0xff]
    %v126 = vld [vmem:[#allocation7 + $0xc0] sm:$0xff]
    %v127 = vld [vmem:[#allocation7 + $0xc8] sm:$0xff]
    %v128 = vld [vmem:[#allocation7 + $0xd0] sm:$0xff]
    %v129 = vld [vmem:[#allocation7 + $0xd8] sm:$0xff]
    %v130 = vld [vmem:[#allocation7 + $0xe0] sm:$0xff]
    %v131 = vld [vmem:[#allocation7 + $0xe8] sm:$0xff]
    %v132 = vld [vmem:[#allocation7 + $0xf0] sm:$0xff]
    %v133 = vld [vmem:[#allocation7 + $0xf8] sm:$0xff]
    %v134 = vld [vmem:[%s2] sm:$0x3]
    %v136 = vperm.slane %v134, 0
    %v137 = vperm.slane %v134, 1
    %140 = vmatpush.msra.mxu0 %v100
    %141 = vmatpush.msra.mxu0 %v98
    %142 = vmatpush.msra.mxu0 %v96
    %143 = vmatpush.msra.mxu0 %v94
    %144 = vmatpush.msra.mxu0 %v92
    %145 = vmatpush.msra.mxu0 %v90
    %146 = vmatpush.msra.mxu0 %v88
    %147 = vmatpush.msra.mxu0 %v86
    %148 = vmatpush.msra.mxu0 %v84
    %149 = vmatpush.msra.mxu0 %v82
    %150 = vmatpush.msra.mxu0 %v80
    %151 = vmatpush.msra.mxu0 %v78
    %152 = vmatpush.msra.mxu0 %v76
    %153 = vmatpush.msra.mxu0 %v74
    %154 = vmatpush.msra.mxu0 %v72
    %155 = vmatpush.msra.mxu0 %v70
    %156 = vmatmul.f32.gmra.mxu0 %v68
    %v157 = vpop.f32.mrf.mxu0
    %v158 = vadd.f32 %v136, %v157
    %159 = vmatmul.f32.gmra.mxu0 %v69
    %v160 = vpop.f32.mrf.mxu0
    %v161 = vadd.f32 %v136, %v160
    %162 = vdwg.mxu0
    %163 = vmatpush.msra.mxu0 %v101
    %164 = vmatpush.msra.mxu0 %v99
    %165 = vmatpush.msra.mxu0 %v97
    %166 = vmatpush.msra.mxu0 %v95
    %167 = vmatpush.msra.mxu0 %v93
    %168 = vmatpush.msra.mxu0 %v91
    %169 = vmatpush.msra.mxu0 %v89
    %170 = vmatpush.msra.mxu0 %v87
    %171 = vmatpush.msra.mxu0 %v85
    %172 = vmatpush.msra.mxu0 %v83
    %173 = vmatpush.msra.mxu0 %v81
    %174 = vmatpush.msra.mxu0 %v79
    %175 = vmatpush.msra.mxu0 %v77
    %176 = vmatpush.msra.mxu0 %v75
    %177 = vmatpush.msra.mxu0 %v73
    %178 = vmatpush.msra.mxu0 %v71
    %179 = vmatmul.f32.gmra.mxu0 %v68
    %v180 = vpop.f32.mrf.mxu0
    %v181 = vadd.f32 %v137, %v180
    %182 = vmatmul.f32.gmra.mxu0 %v69
    %v183 = vpop.f32.mrf.mxu0
    %v184 = vadd.f32 %v137, %v183
    %185 = vdwg.mxu0
    %v186 = vmul.f32 %v158, 0.5
    %v187 = vmul.f32 %v181, 0.5
    %v188 = vmul.f32 %v161, 0.5
    %v189 = vmul.f32 %v184, 0.5
    %v190 = vmul.f32 %v158, 0.70710677
    %v191 = vmul.f32 %v181, 0.70710677
    %v192 = vmul.f32 %v161, 0.70710677
    %v193 = vmul.f32 %v184, 0.70710677
    %v194 = vmul.f32 %v190, %v190
    %v195 = vmin.f32 16.0, %v194
    %v196 = vmul.f32 %v195, 2.1237322e-06
    %v197 = vadd.f32 %v196, 0.00028619796
    %v198 = vmul.f32 %v195, %v197
    %v199 = vadd.f32 %v198, 0.0036580483
    %v200 = vmul.f32 %v195, %v199
    %v201 = vadd.f32 %v200, 0.05243302
    %v202 = vmul.f32 %v195, %v201
    %v203 = vadd.f32 %v202, 0.18741608
    %v204 = vmul.f32 %v195, %v203
    %v205 = vadd.f32 %v204, 1.1283791
    %v206 = vmul.f32 %v190, %v205
    %v207 = vmul.f32 %v195, 3.8918573e-05
    %v208 = vadd.f32 %v207, 0.001143296
    %v209 = vmul.f32 %v195, %v208
    %v210 = vadd.f32 %v209, 0.014752088
    %v211 = vmul.f32 %v195, %v210
    %v212 = vadd.f32 %v211, 0.112945676
    %v213 = vmul.f32 %v195, %v212
    %v214 = vadd.f32 %v213, 0.4994258
    %v215 = vmul.f32 %v195, %v214
    %v216 = vadd.f32 %v215, 1.0
    %v217 = vrcp.pop %v216
    %v218 = vmul.f32 %v216, %v217
    %v219 = vsub.f32 1.0, %v218
    %v220 = vmul.f32 %v217, %v219
    %v221 = vadd.f32 %v217, %v220
    %vm222 = vweird.f32 %v216
    %vm223 = vweird.f32 %v217
    %vm224 = vmor %vm222, %vm223
    %v225 = vsel %vm224, %v217, %v221
    %v226 = vand.u32 2147483647, %v216
    %vm227 = vcmp.eq.f32.partialorder %v226, 8.507059e+37
    %v228 = vand.u32 %v216, 2147483648
    %v229 = vor.u32 1.1754944e-38, %v228
    %v230 = vsel %vm227, %v229, %v225
    %v231 = vmul.f32 %v206, %v230
    %v232 = vmin.f32 %v231, 1.0
    %v233 = vmax.f32 %v232, -1.0
    %v234 = vmul.f32 %v191, %v191
    %v235 = vmin.f32 16.0, %v234
    %v236 = vmul.f32 %v235, 2.1237322e-06
    %v237 = vadd.f32 %v236, 0.00028619796
    %v238 = vmul.f32 %v235, %v237
    %v239 = vadd.f32 %v238, 0.0036580483
    %v240 = vmul.f32 %v235, %v239
    %v241 = vadd.f32 %v240, 0.05243302
    %v242 = vmul.f32 %v235, %v241
    %v243 = vadd.f32 %v242, 0.18741608
    %v244 = vmul.f32 %v235, %v243
    %v245 = vadd.f32 %v244, 1.1283791
    %v246 = vmul.f32 %v191, %v245
    %v247 = vmul.f32 %v235, 3.8918573e-05
    %v248 = vadd.f32 %v247, 0.001143296
    %v249 = vmul.f32 %v235, %v248
    %v250 = vadd.f32 %v249, 0.014752088
    %v251 = vmul.f32 %v235, %v250
    %v252 = vadd.f32 %v251, 0.112945676
    %v253 = vmul.f32 %v235, %v252
    %v254 = vadd.f32 %v253, 0.4994258
    %v255 = vmul.f32 %v235, %v254
    %v256 = vadd.f32 %v255, 1.0
    %v257 = vrcp.pop %v256
    %v258 = vmul.f32 %v256, %v257
    %v259 = vsub.f32 1.0, %v258
    %v260 = vmul.f32 %v257, %v259
    %v261 = vadd.f32 %v257, %v260
    %vm262 = vweird.f32 %v256
    %vm263 = vweird.f32 %v257
    %vm264 = vmor %vm262, %vm263
    %v265 = vsel %vm264, %v257, %v261
    %v266 = vand.u32 2147483647, %v256
    %vm267 = vcmp.eq.f32.partialorder %v266, 8.507059e+37
    %v268 = vand.u32 %v256, 2147483648
    %v269 = vor.u32 1.1754944e-38, %v268
    %v270 = vsel %vm267, %v269, %v265
    %v271 = vmul.f32 %v246, %v270
    %v272 = vmin.f32 %v271, 1.0
    %v273 = vmax.f32 %v272, -1.0
    %v274 = vmul.f32 %v192, %v192
    %v275 = vmin.f32 16.0, %v274
    %v276 = vmul.f32 %v275, 2.1237322e-06
    %v277 = vadd.f32 %v276, 0.00028619796
    %v278 = vmul.f32 %v275, %v277
    %v279 = vadd.f32 %v278, 0.0036580483
    %v280 = vmul.f32 %v275, %v279
    %v281 = vadd.f32 %v280, 0.05243302
    %v282 = vmul.f32 %v275, %v281
    %v283 = vadd.f32 %v282, 0.18741608
    %v284 = vmul.f32 %v275, %v283
    %v285 = vadd.f32 %v284, 1.1283791
    %v286 = vmul.f32 %v192, %v285
    %v287 = vmul.f32 %v275, 3.8918573e-05
    %v288 = vadd.f32 %v287, 0.001143296
    %v289 = vmul.f32 %v275, %v288
    %v290 = vadd.f32 %v289, 0.014752088
    %v291 = vmul.f32 %v275, %v290
    %v292 = vadd.f32 %v291, 0.112945676
    %v293 = vmul.f32 %v275, %v292
    %v294 = vadd.f32 %v293, 0.4994258
    %v295 = vmul.f32 %v275, %v294
    %v296 = vadd.f32 %v295, 1.0
    %v297 = vrcp.pop %v296
    %v298 = vmul.f32 %v296, %v297
    %v299 = vsub.f32 1.0, %v298
    %v300 = vmul.f32 %v297, %v299
    %v301 = vadd.f32 %v297, %v300
    %vm302 = vweird.f32 %v296
    %vm303 = vweird.f32 %v297
    %vm304 = vmor %vm302, %vm303
    %v305 = vsel %vm304, %v297, %v301
    %v306 = vand.u32 2147483647, %v296
    %vm307 = vcmp.eq.f32.partialorder %v306, 8.507059e+37
    %v308 = vand.u32 %v296, 2147483648
    %v309 = vor.u32 1.1754944e-38, %v308
    %v310 = vsel %vm307, %v309, %v305
    %v311 = vmul.f32 %v286, %v310
    %v312 = vmin.f32 %v311, 1.0
    %v313 = vmax.f32 %v312, -1.0
    %v314 = vmul.f32 %v193, %v193
    %v315 = vmin.f32 16.0, %v314
    %v316 = vmul.f32 %v315, 2.1237322e-06
    %v317 = vadd.f32 %v316, 0.00028619796
    %v318 = vmul.f32 %v315, %v317
    %v319 = vadd.f32 %v318, 0.0036580483
    %v320 = vmul.f32 %v315, %v319
    %v321 = vadd.f32 %v320, 0.05243302
    %v322 = vmul.f32 %v315, %v321
    %v323 = vadd.f32 %v322, 0.18741608
    %v324 = vmul.f32 %v315, %v323
    %v325 = vadd.f32 %v324, 1.1283791
    %v326 = vmul.f32 %v193, %v325
    %v327 = vmul.f32 %v315, 3.8918573e-05
    %v328 = vadd.f32 %v327, 0.001143296
    %v329 = vmul.f32 %v315, %v328
    %v330 = vadd.f32 %v329, 0.014752088
    %v331 = vmul.f32 %v315, %v330
    %v332 = vadd.f32 %v331, 0.112945676
    %v333 = vmul.f32 %v315, %v332
    %v334 = vadd.f32 %v333, 0.4994258
    %v335 = vmul.f32 %v315, %v334
    %v336 = vadd.f32 %v335, 1.0
    %v337 = vrcp.pop %v336
    %v338 = vmul.f32 %v336, %v337
    %v339 = vsub.f32 1.0, %v338
    %v340 = vmul.f32 %v337, %v339
    %v341 = vadd.f32 %v337, %v340
    %vm342 = vweird.f32 %v336
    %vm343 = vweird.f32 %v337
    %vm344 = vmor %vm342, %vm343
    %v345 = vsel %vm344, %v337, %v341
    %v346 = vand.u32 2147483647, %v336
    %vm347 = vcmp.eq.f32.partialorder %v346, 8.507059e+37
    %v348 = vand.u32 %v336, 2147483648
    %v349 = vor.u32 1.1754944e-38, %v348
    %v350 = vsel %vm347, %v349, %v345
    %v351 = vmul.f32 %v326, %v350
    %v352 = vmin.f32 %v351, 1.0
    %v353 = vmax.f32 %v352, -1.0
    %v354 = vadd.f32 %v233, 1.0
    %v355 = vadd.f32 %v273, 1.0
    %v356 = vadd.f32 %v313, 1.0
    %v357 = vadd.f32 %v353, 1.0
    %v358 = vmul.f32 %v186, %v354
    %v359 = vmul.f32 %v187, %v355
    %v360 = vmul.f32 %v188, %v356
    %v361 = vmul.f32 %v189, %v357
    %v362 = vld [vmem:[%s4] sm:$0x1]
    %v364 = vperm.slane %v362, 0
    %366 = vmatpush.msra.mxu0 %v117
    %367 = vmatpush.msra.mxu0 %v116
    %368 = vmatpush.msra.mxu0 %v115
    %369 = vmatpush.msra.mxu0 %v114
    %370 = vmatpush.msra.mxu0 %v113
    %371 = vmatpush.msra.mxu0 %v112
    %372 = vmatpush.msra.mxu0 %v111
    %373 = vmatpush.msra.mxu0 %v110
    %374 = vmatpush.msra.mxu0 %v109
    %375 = vmatpush.msra.mxu0 %v108
    %376 = vmatpush.msra.mxu0 %v107
    %377 = vmatpush.msra.mxu0 %v106
    %378 = vmatpush.msra.mxu0 %v105
    %379 = vmatpush.msra.mxu0 %v104
    %380 = vmatpush.msra.mxu0 %v103
    %381 = vmatpush.msra.mxu0 %v102
    %382 = vmatmul.f32.gmra.mxu0 %v358
    %v383 = vpop.f32.mrf.mxu0
    %v384 = vadd.f32 %v364, %v383
    %385 = vmatmul.f32.gmra.mxu0 %v360
    %v386 = vpop.f32.mrf.mxu0
    %v387 = vadd.f32 %v364, %v386
    %388 = vdwg.mxu0
    %389 = vmatpush.msra.mxu0 %v133
    %390 = vmatpush.msra.mxu0 %v132
    %391 = vmatpush.msra.mxu0 %v131
    %392 = vmatpush.msra.mxu0 %v130
    %393 = vmatpush.msra.mxu0 %v129
    %394 = vmatpush.msra.mxu0 %v128
    %395 = vmatpush.msra.mxu0 %v127
    %396 = vmatpush.msra.mxu0 %v126
    %397 = vmatpush.msra.mxu0 %v125
    %398 = vmatpush.msra.mxu0 %v124
    %399 = vmatpush.msra.mxu0 %v123
    %400 = vmatpush.msra.mxu0 %v122
    %401 = vmatpush.msra.mxu0 %v121
    %402 = vmatpush.msra.mxu0 %v120
    %403 = vmatpush.msra.mxu0 %v119
    %404 = vmatpush.msra.mxu0 %v118
    %405 = vmatmul.f32.gmra.mxu0 %v359
    %v406 = vpop.f32.mrf.mxu0
    %v407 = vadd.f32 %v384, %v406
    %408 = vmatmul.f32.gmra.mxu0 %v361
    %v409 = vpop.f32.mrf.mxu0
    %v410 = vadd.f32 %v387, %v409
    %411 = vdwg.mxu0
    %412 = vst [vmem:[#allocation8] sm:$0xff] %v407
    %413 = vst [vmem:[#allocation8 + $0x8] sm:$0xff] %v410
    // Predicated region
    $region34: #{feed_forward.1} parent=1 // pred_check
      _
    $region35: #{feed_forward.1} parent=1 // pred_check_branch
      %415 = sbr.rel (0) target = $region37
    $region36: #{feed_forward.1} parent=1 // pred_region
      %417 = vsyncadd [#allocation4], 0
      %s418 = sshll.u32 [#allocation8], 4
      %s419 = int_to_ptr.vmem [resolvable:$true] %s418
      %s420 = sshll.u32 %s5, 4
      %s421 = int_to_ptr.hbm [resolvable:$true] %s420
      %426 = dma.vmem_to_hbm [thread:$0]  %s419, 256, %s421, [#allocation4], 128, 128, 8
    $region37: #{feed_forward.1} parent=1 // pred_fallthru
      _
    // Predicated region
    $region38: #{feed_forward.1} parent=1 // pred_check
      _
    $region39: #{feed_forward.1} parent=1 // pred_check_branch
      %428 = sbr.rel (0) target = $region41
    $region40: #{feed_forward.1} parent=1 // pred_region
      %430 = dma.done [#allocation4], 256
    $region41: #{feed_forward.1} parent=1 // pred_fallthru
      _
    %431 = vsyncpa [#allocation3], 1
    %432 = vsyncpa [#allocation6], 1
    %433 = vsyncpa [#allocation4], 1

</llo_original>
